<compile_context>
chip_gen: v5e
topology: v5e:2x2
jax: 0.10.0
libtpu: 0.0.40
codegen_flags: <defaults>
</compile_context>

<pallas_src>
import jax
import jax.numpy as jnp
from jax.experimental import pallas as pl
from jax.experimental.pallas import tpu as pltpu


def _round_up(x, m):
    return (x + m - 1) // m * m


_VMEM_BUDGET = 40 * 1024 * 1024      # tile budget; leaves headroom on v7x (64 MiB)
_VMEM_LIMIT_CAP = 48 * 1024 * 1024   # never request more scoped VMEM than this


def _tile_bytes(tm, tn, d, dx, dw, do):
    """Double-buffered x / W / bias input tiles + double-buffered output tile."""
    return 2 * (tm * d * dx + d * tn * dw + tn * 4 + tm * tn * do)


# ----------------------------------------------------------------------------
# Pallas kernel: fused multi-head linear  y = x @ W_packed + b_packed
# ----------------------------------------------------------------------------
def _fused_heads_kernel(x_ref, w_ref, b_ref, o_ref):
    # x_ref: (tm, D) resident per batch tile; w_ref: (D, tn); b_ref: (1, tn).
    # One full-K MXU contraction per output tile: no accumulator round-trip,
    # f32 accumulation via preferred_element_type, bias folded in f32.
    acc = jnp.dot(x_ref[...], w_ref[...], preferred_element_type=jnp.float32)
    o_ref[...] = (acc + b_ref[...].astype(jnp.float32)).astype(o_ref.dtype)


def fused_linear(x, w_packed, b_packed, *, out_dtype=None, tm_max=512):
    """y = x @ w_packed + b_packed for all heads at once.

    x: [B, D], w_packed: [D, Cp] (Cp % 128 == 0), b_packed: [1, Cp] -> [B, Cp].
    """
    B, D = x.shape
    Dw, Cp = w_packed.shape
    assert D == Dw and Cp % 128 == 0 and b_packed.shape == (1, Cp)
    if out_dtype is None:
        out_dtype = b_packed.dtype

    # Batch tile: as large as possible (maximizes packed-weight reuse).
    if B <= tm_max:
        tm, Bp = B, B
    else:
        tm = tm_max
        Bp = _round_up(B, tm)
        if Bp != B:
            x = jnp.pad(x, ((0, Bp - B), (0, 0)))
    nb = Bp // tm

    dx = jnp.dtype(x.dtype).itemsize
    dw = jnp.dtype(w_packed.dtype).itemsize
    do = jnp.dtype(out_dtype).itemsize

    # Class tile: lane-dense, >=256 preferred for the 256-wide MXU (v6e/v7x),
    # shrunk only if the full-D tiles would blow the VMEM budget.
    tn = None
    for cand in (512, 256, 128):
        if Cp % cand == 0 and _tile_bytes(tm, cand, D, dx, dw, do) <= _VMEM_BUDGET:
            tn = cand
            break
    if tn is None:
        # TODO(synk): add a K-tiled accumulator fallback for huge feature dims
        # (D >> 10k); classifier-head feature dims always fit the budget.
        tn = 128
    # Keep at least one "parallel" grid axis with extent >= 2 so v7x's second
    # TensorCore gets work when the batch fits in a single tile.
    if nb == 1 and Cp // tn == 1 and tn % 256 == 0:
        tn //= 2

    grid = (nb, Cp // tn)

    need = _tile_bytes(tm, tn, D, dx, dw, do)
    vmem_limit = int(min(_VMEM_LIMIT_CAP, max(16 * 1024 * 1024, 2 * need)))

    cost = pl.CostEstimate(
        flops=2 * Bp * D * Cp,
        transcendentals=0,
        bytes_accessed=Bp * D * dx + D * Cp * dw + Cp * 4 + Bp * Cp * do,
    )

    y = pl.pallas_call(
        _fused_heads_kernel,
        out_shape=jax.ShapeDtypeStruct((Bp, Cp), out_dtype),
        grid_spec=pltpu.PrefetchScalarGridSpec(
            num_scalar_prefetch=0,
            grid=grid,
            in_specs=[
                # x: full feature dim, resident across the class axis.
                pl.BlockSpec((tm, D), lambda i, j: (i, 0)),
                # W: streamed once per batch tile, lane-dense class tiles.
                pl.BlockSpec((D, tn), lambda i, j: (0, j)),
                # bias: tiny per-class-tile slice (f32).
                pl.BlockSpec((1, tn), lambda i, j: (0, j)),
            ],
            out_specs=pl.BlockSpec((tm, tn), lambda i, j: (i, j)),
        ),
        compiler_params=pltpu.CompilerParams(
            dimension_semantics=("parallel", "parallel"),
            vmem_limit_bytes=vmem_limit,
        ),
        cost_estimate=cost,
    )(x, w_packed, b_packed)

    return y[:B] if Bp != B else y


# ----------------------------------------------------------------------------
# AllClassifiers equivalent: dict of linear heads, fused into one matmul
# ----------------------------------------------------------------------------
class AllClassifiers:
    """JAX/Pallas port of StableRep's AllClassifiers.

    classifiers_params: dict name -> (weight [D, C_h], bias [C_h])

    All heads are pre-packed (once, here) into a single lane-padded [D, Cp]
    weight and [1, Cp] bias so forward() is a single fused Pallas matmul;
    outputs are sliced back per head. Weights/activations run in bf16 by
    default (f32 accumulation + f32 bias in-kernel); pass
    compute_dtype=jnp.float32 for an exact path.
    """

    def __init__(self, classifiers_params, compute_dtype=jnp.bfloat16):
        names = list(classifiers_params.keys())
        assert names, "AllClassifiers needs at least one head"

        ws, bs = [], []
        spans = {}
        off = 0
        feat_dim = None
        for name in names:
            w, b = classifiers_params[name]
            d, c = w.shape
            if feat_dim is None:
                feat_dim = d
            assert d == feat_dim, "all heads must share feat_dim"
            assert b.shape == (c,)
            spans[name] = (off, c)
            off += c
            ws.append(w)
            bs.append(b)

        c_total = off
        # Pad the packed class axis to a multiple of 256 so class tiles are
        # always >= 256 lanes wide (feeds the 2x256x256 MXU on v6e/v7x).
        cp = _round_up(max(c_total, 256), 256)

        w_packed = jnp.concatenate(ws, axis=1)
        b_packed = jnp.concatenate(bs, axis=0)[None, :]
        pad = cp - c_total
        if pad:
            w_packed = jnp.pad(w_packed, ((0, 0), (0, pad)))
            b_packed = jnp.pad(b_packed, ((0, 0), (0, pad)))

        self._out_dtype = w_packed.dtype          # f32 outputs by default
        self._compute_dtype = compute_dtype
        if compute_dtype is not None:
            w_packed = w_packed.astype(compute_dtype)   # halves W HBM traffic
        b_packed = b_packed.astype(jnp.float32)         # bias stays f32

        self._w_packed = w_packed
        self._b_packed = b_packed
        self._spans = spans

    def __len__(self):
        return len(self._spans)

    def forward(self, inputs):
        x = inputs
        if self._compute_dtype is not None:
            x = x.astype(self._compute_dtype)
        y = fused_linear(
            x, self._w_packed, self._b_packed, out_dtype=self._out_dtype
        )
        # Mirrors: {k: v.forward(inputs) for k, v in self.classifiers_dict.items()}
        return {
            name: y[:, off : off + c] for name, (off, c) in self._spans.items()
        }

    __call__ = forward


def _init_linear_params(key, feat_dim, num_classes, dtype=jnp.float32):
    """Deterministic init mimicking nn.Linear (uniform in +-1/sqrt(fan_in))."""
    kw, kb = jax.random.split(key)
    bound = 1.0 / (feat_dim ** 0.5)
    # PyTorch nn.Linear weight is [C, D]; we store its transpose [D, C].
    w = jax.random.uniform(kw, (feat_dim, num_classes), dtype, -bound, bound)
    b = jax.random.uniform(kb, (num_classes,), dtype, -bound, bound)
    return w, b


if __name__ == "__main__":
    key = jax.random.PRNGKey(0)

    batch = 8
    feat_dim = 32
    head_specs = {"head_lr0": 16, "head_lr1": 32, "head_lr2": 16}

    k_in, *k_heads = jax.random.split(key, 1 + len(head_specs))

    # Synthetic feature batch (what StableRep feeds the classifier heads).
    x = jax.random.normal(k_in, (batch, feat_dim), dtype=jnp.float32)

    params = {
        name: _init_linear_params(kh, feat_dim, num_classes)
        for (name, num_classes), kh in zip(head_specs.items(), k_heads)
    }

    # Default bf16 compute path (f32 accumulation + f32 bias in-kernel).
    model_bf16 = AllClassifiers(params)
    out_bf16 = model_bf16(x)
    out_bf16 = jax.tree_util.tree_map(jax.block_until_ready, out_bf16)

    # Exact f32 path for a tight-tolerance correctness check.
    model_f32 = AllClassifiers(params, compute_dtype=jnp.float32)
    out_f32 = model_f32(x)
    out_f32 = jax.tree_util.tree_map(jax.block_until_ready, out_f32)

    for name, (w, b) in params.items():
        ref = x @ w + b
        assert out_f32[name].shape == (batch, head_specs[name]), name
        assert out_bf16[name].shape == (batch, head_specs[name]), name
        assert jnp.allclose(out_f32[name], ref, atol=1e-5, rtol=1e-5), name
        assert jnp.allclose(out_bf16[name], ref, atol=2e-2, rtol=2e-2), name

    print("KERNEL_OK")
</pallas_src>

<mosaic_0001>
module attributes {stable_mosaic.version = 11 : i64} {
  func.func @_fused_heads_kernel(%arg0: i32, %arg1: i32, %arg2: memref<8x32xbf16, #tpu.memory_space<vmem>>, %arg3: memref<32x128xbf16, #tpu.memory_space<vmem>>, %arg4: memref<1x128xf32, #tpu.memory_space<vmem>>, %arg5: memref<8x128xf32, #tpu.memory_space<vmem>>) attributes {dimension_semantics = [#tpu.dimension_semantics<parallel>, #tpu.dimension_semantics<parallel>], iteration_bounds = array<i64: 1, 2>, scalar_prefetch = 0 : i64, scratch_operands = 0 : i64, tpu.core_type = #tpu.core_type<tc>, window_params = [{transform_indices = @transform_0, window_bounds = array<i64: 8, 32>}, {transform_indices = @transform_1, window_bounds = array<i64: 32, 128>}, {transform_indices = @transform_2, window_bounds = array<i64: 1, 128>}, {transform_indices = @transform_3, window_bounds = array<i64: 8, 128>}]} {
    %c0 = arith.constant 0 : index
    %c0_0 = arith.constant 0 : index
    %0 = vector.load %arg2[%c0, %c0_0] : memref<8x32xbf16, #tpu.memory_space<vmem>>, vector<8x32xbf16>
    %c0_1 = arith.constant 0 : index
    %c0_2 = arith.constant 0 : index
    %1 = vector.load %arg3[%c0_1, %c0_2] : memref<32x128xbf16, #tpu.memory_space<vmem>>, vector<32x128xbf16>
    %cst = arith.constant dense<0.000000e+00> : vector<8x128xf32>
    %2 = tpu.matmul %0, %1, %cst {dimension_numbers = #tpu.dot_dimension_numbers<[1], [0], [0], [1], [0, 0, 1, 1], [], []>} : vector<8x32xbf16>, vector<32x128xbf16>, vector<8x128xf32> -> vector<8x128xf32>
    %c0_3 = arith.constant 0 : index
    %c0_4 = arith.constant 0 : index
    %3 = vector.load %arg4[%c0_3, %c0_4] : memref<1x128xf32, #tpu.memory_space<vmem>>, vector<1x128xf32>
    %4 = vector.broadcast %3 : vector<1x128xf32> to vector<8x128xf32>
    %5 = arith.addf %2, %4 : vector<8x128xf32>
    %c0_5 = arith.constant 0 : index
    %c0_6 = arith.constant 0 : index
    %6 = vector.load %arg5[%c0_5, %c0_6] : memref<8x128xf32, #tpu.memory_space<vmem>>, vector<8x128xf32>
    tpu.vector_store %arg5[%c0_5, %c0_6], %5 {strides = array<i32>} : memref<8x128xf32, #tpu.memory_space<vmem>>, vector<8x128xf32>,
    return
  }
  func.func @transform_0(%arg0: i32, %arg1: i32) -> (i32, i32) {
    %c0_i32 = arith.constant 0 : i32
    %c0_i32_0 = arith.constant 0 : i32
    return %arg0, %c0_i32 : i32, i32
  }
  func.func @transform_1(%arg0: i32, %arg1: i32) -> (i32, i32) {
    %c0_i32 = arith.constant 0 : i32
    %c0_i32_0 = arith.constant 0 : i32
    return %c0_i32, %arg1 : i32, i32
  }
  func.func @transform_2(%arg0: i32, %arg1: i32) -> (i32, i32) {
    %c0_i32 = arith.constant 0 : i32
    %c0_i32_0 = arith.constant 0 : i32
    return %c0_i32, %arg1 : i32, i32
  }
  func.func @transform_3(%arg0: i32, %arg1: i32) -> (i32, i32) {
    %c0_i32 = arith.constant 0 : i32
    return %arg0, %arg1 : i32, i32
  }
}

</mosaic_0001>

<llo_original>
// kernel: tpu_custom_call.1
$region0: #{tpu_custom_call.1}
  #allocation0 [shape = 'u32[]', space=smem, size = 0x4, offset = 0x4, fixed_abs, tag = 'smem constant byte address 0x4 - core index']
  #allocation1 [shape = 'u32[72,128]{1,0:T(1,128)}', space=vmem, size = 0x9000, scoped, tag = 'internal scratch']
  %s0 = inlined_call_operand.hbm [shape: bf16[8,32], index: 0, kind: input, shape index: {}]
  %s1 = inlined_call_operand.hbm [shape: bf16[32,256], index: 1, kind: input, shape index: {}]
  %s2 = inlined_call_operand.hbm [shape: f32[1,256], index: 2, kind: input, shape index: {}]
  %s3 = inlined_call_operand.hbm [shape: f32[8,256], index: 3, kind: output, shape index: {}]
  %s4 = sld [smem:[#allocation0]]
  $region57: #{tpu_custom_call.1} parent=0
    _
  %s6 = ssub.s32 1, %s4
  %s7 = scalar_select 0, %s6, %s4
  $region1: #{tpu_custom_call.1} parent=0
    #allocation2 [shape = 'u8[2048]{0}', space=vmem, size = 0x800, scoped, tag = 'input window, operand 0, single buffered']
    #allocation3 [shape = 's32[2]{0}', space=sflag, size = 0x8, scoped, tag = 'scoped memory for tpu_custom_call.1']
    #allocation4 [shape = 's32[2]{0}', space=sflag, size = 0x8, scoped, tag = 'scoped memory for tpu_custom_call.1']
    #allocation5 [shape = 'u8[16384]{0}', space=vmem, size = 0x4000, scoped, tag = 'input window, operand 1']
    #allocation6 [shape = 's32[2]{0}', space=sflag, size = 0x8, scoped, tag = 'scoped memory for tpu_custom_call.1']
    #allocation7 [shape = 'u8[1024]{0}', space=vmem, size = 0x400, scoped, tag = 'input window, operand 2']
    #allocation8 [shape = 'u8[8192]{0}', space=vmem, size = 0x2000, scoped, tag = 'output window, operand 0']
    %8 = vsyncpa [#allocation3], 0
    %9 = vsyncpa [#allocation6], 0
    %s10 = scalar_lea.sflag [#allocation6], 1
    %11 = vsyncpa %s10, 0
    %12 = vsyncpa [#allocation4], 0
    %s13 = scalar_lea.sflag [#allocation4], 1
    %14 = vsyncpa %s13, 0
    loop: start=0, step=1, limit=4
    $region2: #{tpu_custom_call.1} parent=1 // loop_pre_header
      _
    $region3: #{tpu_custom_call.1} parent=1 // loop_header
      %s16 = sphi 0, %s20
      %p17 = scmp.ge.s32.totalorder %s16, 4
      %s23 = sphi 0, %s35
      %s24 = sphi 0, %s31
      %s25 = sphi 0, %s23
      %s26 = sphi 0, %s24
      %s27 = sphi 0, %s25
      %s28 = sphi 0, %s26
      %s38 = sphi 0, %s40
      %s41 = sphi 0, %s38
      %s42 = sphi 0, %s41
      %s58 = sphi 0, %s42
      %s64 = sphi 0, %s66
      %s67 = sphi 0, %s64
      %s68 = sphi 0, %s67
      %s84 = sphi 0, %s68
      %s90 = sphi 0, %s92
      %s93 = sphi 0, %s90
      %s94 = sphi 0, %s93
      %s110 = sphi 0, %s94
      %s118 = sphi 0, %s120
      %s121 = sphi 0, %s118
      %s122 = sphi 0, %s121
      %s138 = sphi 0, %s122
    $region4: #{tpu_custom_call.1} parent=1 // loop_header_branch
      %19 = sbr.rel (%p17) target = $region8
    $region5: #{tpu_custom_call.1} parent=1 // loop_body
      %s21 = ssub.s32 %s16, 1
      %s22 = ssub.s32 %s16, 2
      %s29 = sadd.s32 1, %s24
      %p30 = scmp.ge.s32.totalorder %s29, 2
      %s31 = scalar_select %p30, 0, %s29
      %s32 = sadd.s32 1, %s23
      %s33 = scalar_select %p30, %s32, %s23
      %p34 = scmp.ge.s32.totalorder %s33, 1
      %s35 = scalar_select %p34, 0, %s33
      %s36 = ssub.s32 %s23, %s35
      %p37 = scmp.eq.s32.totalorder %s36, 0
      %s39 = sadd.s32 %s38, 1
      %s40 = scalar_select %p37, %s38, %s39
      %p43 = pneg %p37
      %p44 = scmp.eq.s32.totalorder %s16, 1
      %p45 = por %p43, %p44
      %p46 = scmp.ne.s32.totalorder %s38, %s41
      %p47 = scmp.eq.s32.totalorder %s16, 0
      %p48 = por %p46, %p47
      %p49 = scmp.ne.s32.totalorder %s38, %s41
      %p50 = scmp.eq.s32.totalorder %s21, 1
      %p51 = por %p49, %p50
      %p52 = scmp.ne.s32.totalorder %s41, %s42
      %p53 = scmp.eq.s32.totalorder %s21, 0
      %p54 = por %p52, %p53
      %p55 = scmp.ne.s32.totalorder %s41, %s42
      %p56 = scmp.eq.s32.totalorder %s22, 1
      %p57 = por %p55, %p56
      %p59 = scmp.ne.s32.totalorder %s42, %s58
      %p60 = scmp.eq.s32.totalorder %s22, 0
      %p61 = por %p59, %p60
      %s62 = ssub.s32 %s24, %s31
      %p63 = scmp.eq.s32.totalorder %s62, 0
      %s65 = sadd.s32 %s64, 1
      %s66 = scalar_select %p63, %s64, %s65
      %p69 = pneg %p63
      %p70 = scmp.eq.s32.totalorder %s16, 1
      %p71 = por %p69, %p70
      %p72 = scmp.ne.s32.totalorder %s64, %s67
      %p73 = scmp.eq.s32.totalorder %s16, 0
      %p74 = por %p72, %p73
      %p75 = scmp.ne.s32.totalorder %s64, %s67
      %p76 = scmp.eq.s32.totalorder %s21, 1
      %p77 = por %p75, %p76
      %p78 = scmp.ne.s32.totalorder %s67, %s68
      %p79 = scmp.eq.s32.totalorder %s21, 0
      %p80 = por %p78, %p79
      %p81 = scmp.ne.s32.totalorder %s67, %s68
      %p82 = scmp.eq.s32.totalorder %s22, 1
      %p83 = por %p81, %p82
      %p85 = scmp.ne.s32.totalorder %s68, %s84
      %p86 = scmp.eq.s32.totalorder %s22, 0
      %p87 = por %p85, %p86
      %s88 = ssub.s32 %s24, %s31
      %p89 = scmp.eq.s32.totalorder %s88, 0
      %s91 = sadd.s32 %s90, 1
      %s92 = scalar_select %p89, %s90, %s91
      %p95 = pneg %p89
      %p96 = scmp.eq.s32.totalorder %s16, 1
      %p97 = por %p95, %p96
      %p98 = scmp.ne.s32.totalorder %s90, %s93
      %p99 = scmp.eq.s32.totalorder %s16, 0
      %p100 = por %p98, %p99
      %p101 = scmp.ne.s32.totalorder %s90, %s93
      %p102 = scmp.eq.s32.totalorder %s21, 1
      %p103 = por %p101, %p102
      %p104 = scmp.ne.s32.totalorder %s93, %s94
      %p105 = scmp.eq.s32.totalorder %s21, 0
      %p106 = por %p104, %p105
      %p107 = scmp.ne.s32.totalorder %s93, %s94
      %p108 = scmp.eq.s32.totalorder %s22, 1
      %p109 = por %p107, %p108
      %p111 = scmp.ne.s32.totalorder %s94, %s110
      %p112 = scmp.eq.s32.totalorder %s22, 0
      %p113 = por %p111, %p112
      %s114 = ssub.s32 %s23, %s35
      %s115 = ssub.s32 %s24, %s31
      %s116 = sor.u32 %s114, %s115
      %p117 = scmp.eq.s32.totalorder %s116, 0
      %s119 = sadd.s32 %s118, 1
      %s120 = scalar_select %p117, %s118, %s119
      %p123 = pneg %p117
      %p124 = scmp.eq.s32.totalorder %s16, 1
      %p125 = por %p123, %p124
      %p126 = scmp.ne.s32.totalorder %s118, %s121
      %p127 = scmp.eq.s32.totalorder %s16, 0
      %p128 = por %p126, %p127
      %p129 = scmp.ne.s32.totalorder %s118, %s121
      %p130 = scmp.eq.s32.totalorder %s21, 1
      %p131 = por %p129, %p130
      %p132 = scmp.ne.s32.totalorder %s121, %s122
      %p133 = scmp.eq.s32.totalorder %s21, 0
      %p134 = por %p132, %p133
      %p135 = scmp.ne.s32.totalorder %s121, %s122
      %p136 = scmp.eq.s32.totalorder %s22, 1
      %p137 = por %p135, %p136
      %p139 = scmp.ne.s32.totalorder %s122, %s138
      %p140 = scmp.eq.s32.totalorder %s22, 0
      %p141 = por %p139, %p140
      %p142 = scmp.le.s32.totalorder 1, %s16
      %p143 = scmp.lt.s32.totalorder %s16, 3
      %p144 = pnand %p142, %p143
      %p145 = pneg %p144
      // Predicated region
      $region9: #{tpu_custom_call.1} parent=5 // pred_check
        _
      $region10: #{tpu_custom_call.1} parent=5 // pred_check_branch
        %147 = sbr.rel (%p144) target = $region12
      $region11: #{tpu_custom_call.1} parent=5 // pred_region
        %s148 = ssub.s32 %s16, 1
        // Predicated region
        $region13: #{tpu_custom_call.1} parent=11 // pred_check
          %p149 = pneg %p54
        $region14: #{tpu_custom_call.1} parent=11 // pred_check_branch
          %151 = sbr.rel (%p149) target = $region16
        $region15: #{tpu_custom_call.1} parent=11 // pred_region
          %153 = vsyncadd [#allocation3], 0
          %s154 = smul.addr %s25, 4
          %s155 = scalar_lea.hbm %s0, %s154
          %s157 = sshll.u32 %s155, 4
          %s158 = int_to_ptr.hbm [resolvable:$true] %s157
          %s159 = sshll.u32 [#allocation2], 4
          %s160 = int_to_ptr.vmem [resolvable:$true] %s159
          %162 = dma.hbm_to_vmem [thread:$0]  %s158, 64, %s160, [#allocation3]
        $region16: #{tpu_custom_call.1} parent=11 // pred_fallthru
          _
      $region12: #{tpu_custom_call.1} parent=5 // pred_fallthru
        _
      %p163 = scmp.lt.s32.totalorder %s16, 2
      // Predicated region
      $region17: #{tpu_custom_call.1} parent=5 // pred_check
        %p164 = pneg %p163
      $region18: #{tpu_custom_call.1} parent=5 // pred_check_branch
        %166 = sbr.rel (%p164) target = $region20
      $region19: #{tpu_custom_call.1} parent=5 // pred_region
        // Predicated region
        $region21: #{tpu_custom_call.1} parent=19 // pred_check
          %p167 = pneg %p74
        $region22: #{tpu_custom_call.1} parent=19 // pred_check_branch
          %169 = sbr.rel (%p167) target = $region24
        $region23: #{tpu_custom_call.1} parent=19 // pred_region
          %s170 = sand.u32 %s16, 1
          %s171 = scalar_lea.sflag [#allocation6], %s170
          %s172 = sand.u32 %s64, 1
          %s173 = smul.addr %s172, 16
          %s174 = scalar_lea.vmem [#allocation5], %s173
          %176 = vsyncadd %s171, 0
          %s177 = smul.addr %s24, 4
          %s178 = scalar_lea.hbm %s1, %s177
          %s179 = sshll.u32 %s178, 4
          %s180 = int_to_ptr.hbm [resolvable:$true] %s179
          %s181 = sshll.u32 %s174, 4
          %s182 = int_to_ptr.vmem [resolvable:$true] %s181
          %187 = dma.hbm_to_vmem [thread:$0]  %s180, 256, %s182, %s171, 128, 64, 4
        $region24: #{tpu_custom_call.1} parent=19 // pred_fallthru
          _
        // Predicated region
        $region25: #{tpu_custom_call.1} parent=19 // pred_check
          %p188 = pneg %p100
        $region26: #{tpu_custom_call.1} parent=19 // pred_check_branch
          %190 = sbr.rel (%p188) target = $region28
        $region27: #{tpu_custom_call.1} parent=19 // pred_region
          %s191 = sand.u32 %s16, 1
          %s192 = scalar_lea.sflag [#allocation6], %s191
          %s193 = sand.u32 %s90, 1
          %s194 = scalar_lea.vmem [#allocation7], %s193
          %196 = vsyncadd %s192, 0
          %s197 = scalar_lea.hbm %s2, %s24
          %s199 = sshll.u32 %s197, 4
          %s200 = int_to_ptr.hbm [resolvable:$true] %s199
          %s201 = sshll.u32 %s194, 4
          %s202 = int_to_ptr.vmem [resolvable:$true] %s201
          %204 = dma.hbm_to_vmem [thread:$0]  %s200, 16, %s202, %s192
        $region28: #{tpu_custom_call.1} parent=19 // pred_fallthru
          _
      $region20: #{tpu_custom_call.1} parent=5 // pred_fallthru
        _
      %p205 = scmp.le.s32.totalorder 1, %s16
      %p206 = scmp.lt.s32.totalorder %s16, 3
      %p207 = pnand %p205, %p206
      %p208 = pneg %p207
      // Predicated region
      $region29: #{tpu_custom_call.1} parent=5 // pred_check
        _
      $region30: #{tpu_custom_call.1} parent=5 // pred_check_branch
        %210 = sbr.rel (%p207) target = $region32
      $region31: #{tpu_custom_call.1} parent=5 // pred_region
        %s211 = ssub.s32 %s16, 1
        // Predicated region
        $region33: #{tpu_custom_call.1} parent=31 // pred_check
          %p212 = pneg %p54
        $region34: #{tpu_custom_call.1} parent=31 // pred_check_branch
          %214 = sbr.rel (%p212) target = $region36
        $region35: #{tpu_custom_call.1} parent=31 // pred_region
          %216 = dma.done [#allocation3], 64
        $region36: #{tpu_custom_call.1} parent=31 // pred_fallthru
          _
        %s217 = sand.u32 %s21, 1
        %s218 = scalar_lea.sflag [#allocation6], %s217
        %s219 = sand.u32 %s67, 1
        %s220 = smul.addr %s219, 16
        %s221 = scalar_lea.vmem [#allocation5], %s220
        // Predicated region
        $region37: #{tpu_custom_call.1} parent=31 // pred_check
          %p222 = pneg %p80
        $region38: #{tpu_custom_call.1} parent=31 // pred_check_branch
          %224 = sbr.rel (%p222) target = $region40
        $region39: #{tpu_custom_call.1} parent=31 // pred_region
          %226 = dma.done %s218, 256
        $region40: #{tpu_custom_call.1} parent=31 // pred_fallthru
          _
        %s227 = sand.u32 %s21, 1
        %s228 = scalar_lea.sflag [#allocation6], %s227
        %s229 = sand.u32 %s93, 1
        %s230 = scalar_lea.vmem [#allocation7], %s229
        // Predicated region
        $region41: #{tpu_custom_call.1} parent=31 // pred_check
          %p231 = pneg %p106
        $region42: #{tpu_custom_call.1} parent=31 // pred_check_branch
          %233 = sbr.rel (%p231) target = $region44
        $region43: #{tpu_custom_call.1} parent=31 // pred_region
          %235 = dma.done %s228, 16
        $region44: #{tpu_custom_call.1} parent=31 // pred_fallthru
          _
        %p236 = pneg %p54
        %p237 = pneg %p51
        %s238 = sand.u32 %s21, 1
        %s239 = scalar_lea.sflag [#allocation6], %s238
        %s240 = sand.u32 %s67, 1
        %s241 = smul.addr %s240, 16
        %s242 = scalar_lea.vmem [#allocation5], %s241
        %p243 = pneg %p80
        %p244 = pneg %p77
        %s245 = sand.u32 %s21, 1
        %s246 = scalar_lea.sflag [#allocation6], %s245
        %s247 = sand.u32 %s93, 1
        %s248 = scalar_lea.vmem [#allocation7], %s247
        %p249 = pneg %p106
        %p250 = pneg %p103
        %p251 = pneg %p134
        %p252 = pneg %p131
        %s253 = sand.u32 %s121, 1
        %s254 = scalar_lea.sflag [#allocation4], %s253
        %s255 = sand.u32 %s121, 1
        %s256 = smul.addr %s255, 8
        %s257 = scalar_lea.vmem [#allocation8], %s256
        %v259 = vld [vmem:[#allocation2] sm:$0xf]
        %v260 = vld [vmem:[%s221] sm:$0xf]
        %v261 = vld [vmem:[%s221 + $0x4] sm:$0xf]
        %v262 = vld [vmem:[%s221 + $0x8] sm:$0xf]
        %v263 = vld [vmem:[%s221 + $0xc] sm:$0xf]
        %v264 = vld [vmem:[%s230] sm:$0x1]
        %v266 = vperm.slane %v264, 0
        %v272 = vunpack.c.l.b16 %v260
        %v273 = vunpack.c.l.b16 %v261
        %v274 = vunpack.c.l.b16 %v262
        %v275 = vunpack.c.l.b16 %v263
        %v276 = vpack.c.b16 %v273, %v272
        %v277 = vpack.c.b16 %v275, %v274
        %vm280 = vcmask 261120
        %v282 = vsel %vm280, %v259, 0
        %284 = vmatpush.bf16.msra.mxu0 0
        %285 = vmatpush.bf16.msra.mxu0 0
        %286 = vmatpush.bf16.msra.mxu0 0
        %287 = vmatpush.bf16.msra.mxu0 0
        %288 = vmatpush.bf16.msra.mxu0 0
        %289 = vmatpush.bf16.msra.mxu0 0
        %290 = vmatpush.bf16.msra.mxu0 %v277
        %291 = vmatpush.bf16.msra.mxu0 %v276
        %292 = vmatmul.bf16.gmra.mxu0 %v282
        %v293 = vpop.f32.mrf.mxu0
        %v294 = vadd.f32 %v266, %v293
        %v295 = vpop.f32.mrf.mxu0
        %296 = vdwg.mxu0
        %297 = vst [vmem:[%s257] sm:$0xff] %v294
        %s298 = sand.u32 %s121, 1
        %s299 = scalar_lea.sflag [#allocation4], %s298
        %s300 = sand.u32 %s121, 1
        %s301 = smul.addr %s300, 8
        %s302 = scalar_lea.vmem [#allocation8], %s301
        // Predicated region
        $region45: #{tpu_custom_call.1} parent=31 // pred_check
          %p303 = pneg %p131
        $region46: #{tpu_custom_call.1} parent=31 // pred_check_branch
          %305 = sbr.rel (%p303) target = $region48
        $region47: #{tpu_custom_call.1} parent=31 // pred_region
          %307 = vsyncadd %s299, 0
          %s308 = smul.addr %s25, 2
          %s309 = sadd.s32 %s26, %s308
          %s310 = smul.addr %s309, 8
          %s311 = scalar_lea.hbm %s3, %s310
          %s313 = sshll.u32 %s302, 4
          %s314 = int_to_ptr.vmem [resolvable:$true] %s313
          %s315 = sshll.u32 %s311, 4
          %s316 = int_to_ptr.hbm [resolvable:$true] %s315
          %318 = dma.vmem_to_hbm [thread:$0]  %s314, 128, %s316, %s299
        $region48: #{tpu_custom_call.1} parent=31 // pred_fallthru
          _
      $region32: #{tpu_custom_call.1} parent=5 // pred_fallthru
        _
      %p319 = scmp.le.s32.totalorder 2, %s16
      // Predicated region
      $region49: #{tpu_custom_call.1} parent=5 // pred_check
        %p320 = pneg %p319
      $region50: #{tpu_custom_call.1} parent=5 // pred_check_branch
        %322 = sbr.rel (%p320) target = $region52
      $region51: #{tpu_custom_call.1} parent=5 // pred_region
        %s323 = ssub.s32 %s16, 2
        // Predicated region
        $region53: #{tpu_custom_call.1} parent=51 // pred_check
          %p324 = pneg %p137
        $region54: #{tpu_custom_call.1} parent=51 // pred_check_branch
          %326 = sbr.rel (%p324) target = $region56
        $region55: #{tpu_custom_call.1} parent=51 // pred_region
          %s327 = sand.u32 %s122, 1
          %s328 = scalar_lea.sflag [#allocation4], %s327
          %s329 = sand.u32 %s122, 1
          %s330 = smul.addr %s329, 8
          %s331 = scalar_lea.vmem [#allocation8], %s330
          %333 = dma.done %s328, 128
        $region56: #{tpu_custom_call.1} parent=51 // pred_fallthru
          _
      $region52: #{tpu_custom_call.1} parent=5 // pred_fallthru
        _
    $region6: #{tpu_custom_call.1} parent=1 // loop_footer
      %s20 = sadd.s32 1, %s16
    $region7: #{tpu_custom_call.1} parent=1 // loop_footer_branch
      %15 = sbr.rel target = $region3
    $region8: #{tpu_custom_call.1} parent=1 // loop_exit
      _
    %334 = vsyncpa [#allocation3], 1
    %s335 = scalar_lea.sflag [#allocation3], 1
    %336 = vsyncpa %s335, 1
    %337 = vsyncpa [#allocation6], 1
    %s338 = scalar_lea.sflag [#allocation6], 1
    %339 = vsyncpa %s338, 1
    %340 = vsyncpa [#allocation4], 1
    %s341 = scalar_lea.sflag [#allocation4], 1
    %342 = vsyncpa %s341, 1

</llo_original>
